<compile_context>
chip_gen: v6e
topology: v6e:2x2x1
jax: 0.10.0
libtpu: 0.0.40
codegen_flags: <defaults>
</compile_context>

<pallas_src>
import jax
import jax.numpy as jnp
from jax import lax
from jax.experimental import pallas as pl
from jax.experimental.pallas import tpu as pltpu


def _round_up(x, m):
    return (x + m - 1) // m * m


def _pad2(a, rows, cols):
    pr, pc = rows - a.shape[0], cols - a.shape[1]
    if pr == 0 and pc == 0:
        return a
    return jnp.pad(a, ((0, pr), (0, pc)))


# ---------------------------------------------------------------------------
# kernels (module-level: no closures -> pallas_call trace caching works)
# ---------------------------------------------------------------------------
def _fused_kernel(x_ref, w_ref, b_ref, xa_ref, bm_ref, o_ref, acc_ref):
    """o = x @ W.T + bias + xa @ (scaling*B), reduced over grid axis 2 (K).

    x_ref : [tm, tk]      activations (compute dtype)
    w_ref : [tn, tk]      frozen weight, PyTorch [N, K] layout (compute dtype)
    b_ref : [1, tn]       bias (f32)
    xa_ref: [tm, rp]      precomputed x @ A, rank padded to 128 (compute dtype)
    bm_ref: [rp, tn]      scaling * B, rank padded to 128 (compute dtype)
    """
    k = pl.program_id(2)

    @pl.when(k == 0)
    def _():
        acc_ref[...] = jnp.zeros_like(acc_ref)

    # NT matmul: contract dim 1 of x with dim 1 of W ([N, K] layout, no
    # wrapper-side transpose of the full weight).
    acc_ref[...] += lax.dot_general(
        x_ref[...], w_ref[...],
        dimension_numbers=(((1,), (1,)), ((), ())),
        preferred_element_type=jnp.float32)

    @pl.when(k == pl.num_programs(2) - 1)
    def _():
        # Rank-padded (128-lane) LoRA epilogue in the compute dtype; scaling is
        # already folded into bm.
        adapt = jnp.dot(xa_ref[...], bm_ref[...],
                        preferred_element_type=jnp.float32)
        o_ref[...] = (acc_ref[...] + b_ref[...] + adapt).astype(o_ref.dtype)


def _folded_kernel(x_ref, w_ref, b_ref, o_ref, acc_ref):
    """o = x @ W_eff.T + bias with W_eff = W + scaling*(A@B).T pre-folded."""
    k = pl.program_id(2)

    @pl.when(k == 0)
    def _():
        acc_ref[...] = jnp.zeros_like(acc_ref)

    acc_ref[...] += lax.dot_general(
        x_ref[...], w_ref[...],
        dimension_numbers=(((1,), (1,)), ((), ())),
        preferred_element_type=jnp.float32)

    @pl.when(k == pl.num_programs(2) - 1)
    def _():
        o_ref[...] = (acc_ref[...] + b_ref[...]).astype(o_ref.dtype)


# ---------------------------------------------------------------------------
# wrapper
# ---------------------------------------------------------------------------
def _lora_linear_impl(x, W, bias, A, B, scaling, *,
                      tm=256, tn=512, tk=512,
                      compute_dtype=jnp.bfloat16, fold_weights=False):
    """LoRALinear forward.

    x:    [..., K]   activations
    W:    [N, K]     frozen nn.Linear weight (PyTorch layout, never transposed)
    bias: [N]
    A:    [K, r]
    B:    [r, N]
    """
    orig_dtype = x.dtype
    K = x.shape[-1]
    N = W.shape[0]
    r = A.shape[1]
    lead = x.shape[:-1]

    x2 = x.reshape(-1, K)
    M = x2.shape[0]

    cdt = jnp.dtype(compute_dtype) if compute_dtype is not None else jnp.dtype(orig_dtype)
    hp = lax.Precision.HIGHEST

    # ---- tile selection --------------------------------------------------
    # Sublane granularity 16 for bf16 (packed rows), 8 for f32; lane-dense
    # (multiple of 128) on N and K.  Clamp to the (padded) problem size.
    m_gran = 16 if cdt.itemsize == 2 else 8
    tm = min(tm, _round_up(M, m_gran))
    tn = min(tn, _round_up(N, 128))
    tk = min(tk, _round_up(K, 128))
    # v7x megacore guard: if the (i, j) grid collapsed to a single tile, split
    # N so both TensorCores get work (harmless on single-TC chips).
    if _round_up(M, tm) == tm and _round_up(N, tn) == tn and tn > 128:
        tn = max(128, _round_up(tn // 2, 128))
    Mp, Np, Kp = _round_up(M, tm), _round_up(N, tn), _round_up(K, tk)

    # ---- operand prep ------------------------------------------------------
    xc = x2.astype(cdt)
    if fold_weights:
        # Inference path: the rank-r matmul under-fills the MXU systolic depth,
        # so fold it into the frozen weight ([N, K] layout) and run a single
        # matmul per tile.
        # TODO(synk): cache the folded (and padded) W_eff outside the per-call
        # path for inference; as written the fold is recomputed every call.
        Wc = (W + scaling * jnp.dot(A, B, precision=hp).T).astype(cdt)
    else:
        Wc = W.astype(cdt)

    x_p = _pad2(xc, Mp, Kp)
    w_p = _pad2(Wc, Np, Kp)                                       # stays [N, K]
    b_p = _pad2(bias.astype(jnp.float32).reshape(1, N), 1, Np)

    # ---- VMEM budget (generation aware) -----------------------------------
    rp = _round_up(r, 128)
    ci, oi = cdt.itemsize, jnp.dtype(orig_dtype).itemsize
    rp_eff = 0 if fold_weights else rp
    est = 2 * (tm * tk * ci + tn * tk * ci + tn * 4
               + tm * rp_eff * ci + rp_eff * tn * ci
               + tm * tn * oi) + tm * tn * 4
    # Raise above v5e's 16 MiB scoped default, stay well under v7x's 64 MiB
    # physical VMEM per TensorCore.
    vmem_limit = int(min(max(est * 3 // 2, 24 * 2 ** 20), 48 * 2 ** 20))

    grid = (Mp // tm, Np // tn, Kp // tk)
    cparams = pltpu.CompilerParams(
        dimension_semantics=("parallel", "parallel", "arbitrary"),
        vmem_limit_bytes=vmem_limit)

    if fold_weights:
        out = pl.pallas_call(
            _folded_kernel,
            out_shape=jax.ShapeDtypeStruct((Mp, Np), orig_dtype),
            grid_spec=pltpu.PrefetchScalarGridSpec(
                num_scalar_prefetch=0,
                grid=grid,
                in_specs=[
                    pl.BlockSpec((tm, tk), lambda i, j, k: (i, k)),   # x
                    pl.BlockSpec((tn, tk), lambda i, j, k: (j, k)),   # W_eff [N,K]
                    pl.BlockSpec((1, tn), lambda i, j, k: (0, j)),    # bias
                ],
                out_specs=pl.BlockSpec((tm, tn), lambda i, j, k: (i, j)),
                scratch_shapes=[pltpu.VMEM((tm, tn), jnp.float32)],
            ),
            compiler_params=cparams,
        )(x_p, w_p, b_p)
    else:
        # Hoist x @ A (tiny [M, r]) out of the hot loop; pad rank to 128 lanes
        # and fold `scaling` into B so the kernel needs no scalar plumbing.
        xa = jnp.dot(xc, A.astype(cdt), precision=hp,
                     preferred_element_type=jnp.float32)
        xa_p = _pad2(xa.astype(cdt), Mp, rp)
        bm_p = _pad2((B * scaling).astype(cdt), rp, Np)

        out = pl.pallas_call(
            _fused_kernel,
            out_shape=jax.ShapeDtypeStruct((Mp, Np), orig_dtype),
            grid_spec=pltpu.PrefetchScalarGridSpec(
                num_scalar_prefetch=0,
                grid=grid,
                in_specs=[
                    pl.BlockSpec((tm, tk), lambda i, j, k: (i, k)),   # x
                    pl.BlockSpec((tn, tk), lambda i, j, k: (j, k)),   # W [N,K]
                    pl.BlockSpec((1, tn), lambda i, j, k: (0, j)),    # bias
                    pl.BlockSpec((tm, rp), lambda i, j, k: (i, 0)),   # x@A
                    pl.BlockSpec((rp, tn), lambda i, j, k: (0, j)),   # scaling*B
                ],
                out_specs=pl.BlockSpec((tm, tn), lambda i, j, k: (i, j)),
                scratch_shapes=[pltpu.VMEM((tm, tn), jnp.float32)],   # x@W.T acc
            ),
            compiler_params=cparams,
        )(x_p, w_p, b_p, xa_p, bm_p)

    return out[:M, :N].reshape(*lead, N)


# jitted entry point: tile sizes / dtypes / fold flag are static, so the
# pallas_call trace+compile is cached across calls; `scaling` is a traced
# scalar (no per-value retrace).
lora_linear = jax.jit(
    _lora_linear_impl,
    static_argnames=("tm", "tn", "tk", "compute_dtype", "fold_weights"))


def lora_ref(x, W, bias, A, B, scaling):
    """Pure-JAX reference (exact-f32 matmuls)."""
    hp = lax.Precision.HIGHEST
    lin = jnp.einsum('...k,nk->...n', x, W, precision=hp) + bias
    adapt = jnp.einsum('...k,kn->...n', x,
                       jnp.dot(A, B, precision=hp), precision=hp)
    return lin + adapt * scaling


if __name__ == "__main__":
    key = jax.random.PRNGKey(0)
    r, alpha = 16, 1
    scaling = alpha / r

    # ---- toy shapes implied by the module (f32 compute path) --------------
    batch, seq = 2, 8
    in_features, out_features = 32, 64
    kx, kw, kb, ka, kB = jax.random.split(key, 5)
    x = jax.random.normal(kx, (batch, seq, in_features), dtype=jnp.float32)
    W = jax.random.normal(kw, (out_features, in_features), jnp.float32) * 0.1
    bias = jax.random.normal(kb, (out_features,), jnp.float32) * 0.1
    A = jax.random.normal(ka, (in_features, r), jnp.float32)     # torch.randn-like
    # Module __init__ sets B = zeros; use small randn so the LoRA path is exercised.
    B = jax.random.normal(kB, (r, out_features), jnp.float32) * 0.05

    out = jax.block_until_ready(
        lora_linear(x, W, bias, A, B, scaling, compute_dtype=jnp.float32))
    ref = lora_ref(x, W, bias, A, B, scaling)
    assert out.shape == ref.shape
    assert jnp.allclose(out, ref, atol=1e-4, rtol=1e-4), "toy mismatch"

    # ---- larger shapes: exercise M/N/K tiling, padding, K accumulation ----
    batch2, seq2 = 2, 192          # M = 384 -> Mp = 512 (grid_i = 2, M padded)
    in2, out2 = 1024, 640          # Kp/tk = 2; N = 640 -> Np = 1024 (grid_j = 2)
    k2 = jax.random.split(key, 6)
    x2 = jax.random.normal(k2[0], (batch2, seq2, in2), jnp.float32)
    W2 = jax.random.normal(k2[1], (out2, in2), jnp.float32) * 0.05
    b2 = jax.random.normal(k2[2], (out2,), jnp.float32) * 0.1
    A2 = jax.random.normal(k2[3], (in2, r), jnp.float32) * 0.1
    B2 = jax.random.normal(k2[4], (r, out2), jnp.float32) * 0.05

    ref2 = lora_ref(x2, W2, b2, A2, B2, scaling)

    o_f32 = jax.block_until_ready(
        lora_linear(x2, W2, b2, A2, B2, scaling, compute_dtype=jnp.float32))
    assert jnp.allclose(o_f32, ref2, atol=2e-3, rtol=2e-3), "f32 mismatch"

    o_folded = jax.block_until_ready(
        lora_linear(x2, W2, b2, A2, B2, scaling, compute_dtype=jnp.float32,
                    fold_weights=True))
    assert jnp.allclose(o_folded, ref2, atol=2e-3, rtol=2e-3), "folded mismatch"

    # Default path (bf16 MXU operands, f32 accumulation): compare against a
    # reference whose operands are rounded to bf16 the same way.
    xb = x2.astype(jnp.bfloat16).astype(jnp.float32)
    Wb = W2.astype(jnp.bfloat16).astype(jnp.float32)
    Ab = A2.astype(jnp.bfloat16).astype(jnp.float32)
    Bb = B2.astype(jnp.bfloat16).astype(jnp.float32)
    ref_bf16 = lora_ref(xb, Wb, b2, Ab, Bb, scaling)
    o_bf16 = jax.block_until_ready(lora_linear(x2, W2, b2, A2, B2, scaling))
    assert jnp.allclose(o_bf16, ref_bf16, atol=5e-3, rtol=5e-3), "bf16 mismatch"

    print("KERNEL_OK")
</pallas_src>

<mosaic_0001>
module attributes {stable_mosaic.version = 11 : i64} {
  func.func @_fused_kernel(%arg0: i32, %arg1: i32, %arg2: i32, %arg3: memref<16x128xf32, #tpu.memory_space<vmem>>, %arg4: memref<128x128xf32, #tpu.memory_space<vmem>>, %arg5: memref<1x128xf32, #tpu.memory_space<vmem>>, %arg6: memref<16x128xf32, #tpu.memory_space<vmem>>, %arg7: memref<128x128xf32, #tpu.memory_space<vmem>>, %arg8: memref<16x128xf32, #tpu.memory_space<vmem>>, %arg9: memref<16x128xf32, #tpu.memory_space<vmem>>) attributes {dimension_semantics = [#tpu.dimension_semantics<parallel>, #tpu.dimension_semantics<parallel>, #tpu.dimension_semantics<arbitrary>], iteration_bounds = array<i64: 1, 1, 1>, scalar_prefetch = 0 : i64, scratch_operands = 1 : i64, tpu.core_type = #tpu.core_type<tc>, window_params = [{transform_indices = @transform_0, window_bounds = array<i64: 16, 128>}, {transform_indices = @transform_1, window_bounds = array<i64: 128, 128>}, {transform_indices = @transform_2, window_bounds = array<i64: 1, 128>}, {transform_indices = @transform_3, window_bounds = array<i64: 16, 128>}, {transform_indices = @transform_4, window_bounds = array<i64: 128, 128>}, {transform_indices = @transform_5, window_bounds = array<i64: 16, 128>}]} {
    %c0_i32 = arith.constant 0 : i32
    %0 = arith.cmpi eq, %arg2, %c0_i32 : i32
    %1 = arith.extui %0 : i1 to i32
    %c0_i32_0 = arith.constant 0 : i32
    %2 = arith.cmpi ne, %1, %c0_i32_0 : i32
    scf.if %2 {
      %cst_10 = arith.constant 0.000000e+00 : f32
      %12 = vector.broadcast %cst_10 : f32 to vector<16x128xf32>
      %c0_11 = arith.constant 0 : index
      %c0_12 = arith.constant 0 : index
      %13 = vector.load %arg9[%c0_11, %c0_12] : memref<16x128xf32, #tpu.memory_space<vmem>>, vector<16x128xf32>
      tpu.vector_store %arg9[%c0_11, %c0_12], %12 {strides = array<i32>} : memref<16x128xf32, #tpu.memory_space<vmem>>, vector<16x128xf32>,
    } else {
    }
    %c0 = arith.constant 0 : index
    %c0_1 = arith.constant 0 : index
    %3 = vector.load %arg9[%c0, %c0_1] : memref<16x128xf32, #tpu.memory_space<vmem>>, vector<16x128xf32>
    %c0_2 = arith.constant 0 : index
    %c0_3 = arith.constant 0 : index
    %4 = vector.load %arg3[%c0_2, %c0_3] : memref<16x128xf32, #tpu.memory_space<vmem>>, vector<16x128xf32>
    %c0_4 = arith.constant 0 : index
    %c0_5 = arith.constant 0 : index
    %5 = vector.load %arg4[%c0_4, %c0_5] : memref<128x128xf32, #tpu.memory_space<vmem>>, vector<128x128xf32>
    %cst = arith.constant dense<0.000000e+00> : vector<16x128xf32>
    %6 = tpu.matmul %4, %5, %cst {dimension_numbers = #tpu.dot_dimension_numbers<[1], [1], [0], [0], [0, 0, 1, 0], [], []>} : vector<16x128xf32>, vector<128x128xf32>, vector<16x128xf32> -> vector<16x128xf32>
    %7 = arith.addf %3, %6 : vector<16x128xf32>
    %c0_6 = arith.constant 0 : index
    %c0_7 = arith.constant 0 : index
    %8 = vector.load %arg9[%c0_6, %c0_7] : memref<16x128xf32, #tpu.memory_space<vmem>>, vector<16x128xf32>
    tpu.vector_store %arg9[%c0_6, %c0_7], %7 {strides = array<i32>} : memref<16x128xf32, #tpu.memory_space<vmem>>, vector<16x128xf32>,
    %c0_i32_8 = arith.constant 0 : i32
    %9 = arith.cmpi eq, %arg2, %c0_i32_8 : i32
    %10 = arith.extui %9 : i1 to i32
    %c0_i32_9 = arith.constant 0 : i32
    %11 = arith.cmpi ne, %10, %c0_i32_9 : i32
    scf.if %11 {
      %c0_10 = arith.constant 0 : index
      %c0_11 = arith.constant 0 : index
      %12 = vector.load %arg6[%c0_10, %c0_11] : memref<16x128xf32, #tpu.memory_space<vmem>>, vector<16x128xf32>
      %c0_12 = arith.constant 0 : index
      %c0_13 = arith.constant 0 : index
      %13 = vector.load %arg7[%c0_12, %c0_13] : memref<128x128xf32, #tpu.memory_space<vmem>>, vector<128x128xf32>
      %cst_14 = arith.constant dense<0.000000e+00> : vector<16x128xf32>
      %14 = tpu.matmul %12, %13, %cst_14 {dimension_numbers = #tpu.dot_dimension_numbers<[1], [0], [0], [1], [0, 0, 1, 1], [], []>} : vector<16x128xf32>, vector<128x128xf32>, vector<16x128xf32> -> vector<16x128xf32>
      %c0_15 = arith.constant 0 : index
      %c0_16 = arith.constant 0 : index
      %15 = vector.load %arg9[%c0_15, %c0_16] : memref<16x128xf32, #tpu.memory_space<vmem>>, vector<16x128xf32>
      %c0_17 = arith.constant 0 : index
      %c0_18 = arith.constant 0 : index
      %16 = vector.load %arg5[%c0_17, %c0_18] : memref<1x128xf32, #tpu.memory_space<vmem>>, vector<1x128xf32>
      %17 = vector.broadcast %16 : vector<1x128xf32> to vector<16x128xf32>
      %18 = arith.addf %15, %17 : vector<16x128xf32>
      %19 = arith.addf %18, %14 : vector<16x128xf32>
      %c0_19 = arith.constant 0 : index
      %c0_20 = arith.constant 0 : index
      %20 = vector.load %arg8[%c0_19, %c0_20] : memref<16x128xf32, #tpu.memory_space<vmem>>, vector<16x128xf32>
      tpu.vector_store %arg8[%c0_19, %c0_20], %19 {strides = array<i32>} : memref<16x128xf32, #tpu.memory_space<vmem>>, vector<16x128xf32>,
    } else {
    }
    return
  }
  func.func @transform_0(%arg0: i32, %arg1: i32, %arg2: i32) -> (i32, i32) {
    %c0_i32 = arith.constant 0 : i32
    return %arg0, %arg2 : i32, i32
  }
  func.func @transform_1(%arg0: i32, %arg1: i32, %arg2: i32) -> (i32, i32) {
    %c0_i32 = arith.constant 0 : i32
    return %arg1, %arg2 : i32, i32
  }
  func.func @transform_2(%arg0: i32, %arg1: i32, %arg2: i32) -> (i32, i32) {
    %c0_i32 = arith.constant 0 : i32
    %c0_i32_0 = arith.constant 0 : i32
    return %c0_i32, %arg1 : i32, i32
  }
  func.func @transform_3(%arg0: i32, %arg1: i32, %arg2: i32) -> (i32, i32) {
    %c0_i32 = arith.constant 0 : i32
    %c0_i32_0 = arith.constant 0 : i32
    return %arg0, %c0_i32 : i32, i32
  }
  func.func @transform_4(%arg0: i32, %arg1: i32, %arg2: i32) -> (i32, i32) {
    %c0_i32 = arith.constant 0 : i32
    %c0_i32_0 = arith.constant 0 : i32
    return %c0_i32, %arg1 : i32, i32
  }
  func.func @transform_5(%arg0: i32, %arg1: i32, %arg2: i32) -> (i32, i32) {
    %c0_i32 = arith.constant 0 : i32
    return %arg0, %arg1 : i32, i32
  }
}

</mosaic_0001>

<llo_original>
// kernel: _lora_linear_impl.1
$region0: #{_lora_linear_impl.1}
  #allocation0 [shape = 'u32[]', space=smem, size = 0x4, offset = 0x4, fixed_abs, tag = 'smem constant byte address 0x4 - core index']
  #allocation1 [shape = 'u32[144,128]{1,0:T(1,128)}', space=vmem, size = 0x12000, scoped, tag = 'internal scratch']
  #allocation2 [shape = 'f32[16,128]{1,0:T(8,128)}', space=vmem, size = 0x2000, scoped, tag = 'scratch operand']
  %s0 = inlined_call_operand.vmem [shape: f32[16,128], index: 0, kind: input, shape index: {}]
  %s1 = inlined_call_operand.vmem [shape: f32[128,128], index: 1, kind: input, shape index: {}]
  %s2 = inlined_call_operand.vmem [shape: f32[1,128], index: 2, kind: input, shape index: {}]
  %s3 = inlined_call_operand.vmem [shape: f32[16,128], index: 3, kind: input, shape index: {}]
  %s4 = inlined_call_operand.vmem [shape: f32[128,128], index: 4, kind: input, shape index: {}]
  %s5 = inlined_call_operand.vmem [shape: f32[16,128], index: 5, kind: output, shape index: {}]
  %s6 = sld [smem:[#allocation0]]
  $region38: #{_lora_linear_impl.1} parent=0
    _
  %s8 = ssub.s32 1, %s6
  %s9 = scalar_select 0, %s8, %s6
  // Predicated region
  $region2: #{_lora_linear_impl.1} parent=0 // pred_check
    _
  $region3: #{_lora_linear_impl.1} parent=0 // pred_check_branch
    %11 = sbr.rel (0) target = $region5
  $region4: #{_lora_linear_impl.1} parent=0 // pred_region
    _
  $region5: #{_lora_linear_impl.1} parent=0 // pred_fallthru
    _
  // Predicated region
  $region6: #{_lora_linear_impl.1} parent=0 // pred_check
    _
  $region7: #{_lora_linear_impl.1} parent=0 // pred_check_branch
    %13 = sbr.rel (0) target = $region9
  $region8: #{_lora_linear_impl.1} parent=0 // pred_region
    _
  $region9: #{_lora_linear_impl.1} parent=0 // pred_fallthru
    _
  // Predicated region
  $region10: #{_lora_linear_impl.1} parent=0 // pred_check
    _
  $region11: #{_lora_linear_impl.1} parent=0 // pred_check_branch
    %15 = sbr.rel (0) target = $region13
  $region12: #{_lora_linear_impl.1} parent=0 // pred_region
    _
  $region13: #{_lora_linear_impl.1} parent=0 // pred_fallthru
    _
  // Predicated region
  $region14: #{_lora_linear_impl.1} parent=0 // pred_check
    _
  $region15: #{_lora_linear_impl.1} parent=0 // pred_check_branch
    %17 = sbr.rel (0) target = $region17
  $region16: #{_lora_linear_impl.1} parent=0 // pred_region
    _
  $region17: #{_lora_linear_impl.1} parent=0 // pred_fallthru
    _
  // Predicated region
  $region18: #{_lora_linear_impl.1} parent=0 // pred_check
    _
  $region19: #{_lora_linear_impl.1} parent=0 // pred_check_branch
    %19 = sbr.rel (0) target = $region21
  $region20: #{_lora_linear_impl.1} parent=0 // pred_region
    _
  $region21: #{_lora_linear_impl.1} parent=0 // pred_fallthru
    _
  %p20 = scmp.eq.s32.totalorder 0, 0
  // Predicated region
  $region22: #{_lora_linear_impl.1} parent=0 // pred_check
    %p21 = pneg %p20
  $region23: #{_lora_linear_impl.1} parent=0 // pred_check_branch
    %23 = sbr.rel (%p21) target = $region25
  $region24: #{_lora_linear_impl.1} parent=0 // pred_region
    %24 = vst [vmem:[#allocation2] sm:$0xff] 0.0
    %25 = vst [vmem:[#allocation2 + $0x8] sm:$0xff] 0.0
  $region25: #{_lora_linear_impl.1} parent=0 // pred_fallthru
    _
  %v26 = vld [vmem:[#allocation2] sm:$0xff]
  %v27 = vld [vmem:[#allocation2 + $0x8] sm:$0xff]
  %v28 = vld [vmem:[%s0] sm:$0xff]
  %v29 = vld [vmem:[%s0 + $0x8] sm:$0xff]
  %v30 = vld [vmem:[%s1] sm:$0xff]
  %v31 = vld [vmem:[%s1 + $0x8] sm:$0xff]
  %v32 = vld [vmem:[%s1 + $0x10] sm:$0xff]
  %v33 = vld [vmem:[%s1 + $0x18] sm:$0xff]
  %v34 = vld [vmem:[%s1 + $0x20] sm:$0xff]
  %v35 = vld [vmem:[%s1 + $0x28] sm:$0xff]
  %v36 = vld [vmem:[%s1 + $0x30] sm:$0xff]
  %v37 = vld [vmem:[%s1 + $0x38] sm:$0xff]
  %v38 = vld [vmem:[%s1 + $0x40] sm:$0xff]
  %v39 = vld [vmem:[%s1 + $0x48] sm:$0xff]
  %v40 = vld [vmem:[%s1 + $0x50] sm:$0xff]
  %v41 = vld [vmem:[%s1 + $0x58] sm:$0xff]
  %v42 = vld [vmem:[%s1 + $0x60] sm:$0xff]
  %v43 = vld [vmem:[%s1 + $0x68] sm:$0xff]
  %v44 = vld [vmem:[%s1 + $0x70] sm:$0xff]
  %v45 = vld [vmem:[%s1 + $0x78] sm:$0xff]
  %46 = vmatprep.subr.mxu0 0.0
  %47 = vmatpush1.xpose.msra.mxu0 %v45
  %48 = vmatprep.subr.mxu0 0.0
  %49 = vmatpush1.xpose.msra.mxu0 %v44
  %50 = vmatprep.subr.mxu0 0.0
  %51 = vmatpush1.xpose.msra.mxu0 %v43
  %52 = vmatprep.subr.mxu0 0.0
  %53 = vmatpush1.xpose.msra.mxu0 %v42
  %54 = vmatprep.subr.mxu0 0.0
  %55 = vmatpush1.xpose.msra.mxu0 %v41
  %56 = vmatprep.subr.mxu0 0.0
  %57 = vmatpush1.xpose.msra.mxu0 %v40
  %58 = vmatprep.subr.mxu0 0.0
  %59 = vmatpush1.xpose.msra.mxu0 %v39
  %60 = vmatprep.subr.mxu0 0.0
  %61 = vmatpush1.xpose.msra.mxu0 %v38
  %62 = vmatprep.subr.mxu0 0.0
  %63 = vmatpush1.xpose.msra.mxu0 %v37
  %64 = vmatprep.subr.mxu0 0.0
  %65 = vmatpush1.xpose.msra.mxu0 %v36
  %66 = vmatprep.subr.mxu0 0.0
  %67 = vmatpush1.xpose.msra.mxu0 %v35
  %68 = vmatprep.subr.mxu0 0.0
  %69 = vmatpush1.xpose.msra.mxu0 %v34
  %70 = vmatprep.subr.mxu0 0.0
  %71 = vmatpush1.xpose.msra.mxu0 %v33
  %72 = vmatprep.subr.mxu0 0.0
  %73 = vmatpush1.xpose.msra.mxu0 %v32
  %74 = vmatprep.subr.mxu0 0.0
  %75 = vmatpush1.xpose.msra.mxu0 %v31
  %76 = vmatprep.subr.mxu0 0.0
  %77 = vmatpush1.xpose.msra.mxu0 %v30
  %78 = vmatprep.subr.mxu0 0.0
  %79 = vmatpush2.xpose.msra.mxu0 0.0
  %80 = vmatprep.subr.mxu0 0.0
  %81 = vmatpush2.xpose.msra.mxu0 0.0
  %82 = vmatprep.subr.mxu0 0.0
  %83 = vmatpush2.xpose.msra.mxu0 0.0
  %84 = vmatprep.subr.mxu0 0.0
  %85 = vmatpush2.xpose.msra.mxu0 0.0
  %86 = vmatprep.subr.mxu0 0.0
  %87 = vmatpush2.xpose.msra.mxu0 0.0
  %88 = vmatprep.subr.mxu0 0.0
  %89 = vmatpush2.xpose.msra.mxu0 0.0
  %90 = vmatprep.subr.mxu0 0.0
  %91 = vmatpush2.xpose.msra.mxu0 0.0
  %92 = vmatprep.subr.mxu0 0.0
  %93 = vmatpush2.xpose.msra.mxu0 0.0
  %94 = vmatprep.subr.mxu0 0.0
  %95 = vmatpush2.xpose.msra.mxu0 0.0
  %96 = vmatprep.subr.mxu0 0.0
  %97 = vmatpush2.xpose.msra.mxu0 0.0
  %98 = vmatprep.subr.mxu0 0.0
  %99 = vmatpush2.xpose.msra.mxu0 0.0
  %100 = vmatprep.subr.mxu0 0.0
  %101 = vmatpush2.xpose.msra.mxu0 0.0
  %102 = vmatprep.subr.mxu0 0.0
  %103 = vmatpush2.xpose.msra.mxu0 0.0
  %104 = vmatprep.subr.mxu0 0.0
  %105 = vmatpush2.xpose.msra.mxu0 0.0
  %106 = vmatprep.subr.mxu0 0.0
  %107 = vmatpush2.xpose.msra.mxu0 0.0
  %108 = vmatprep.subr.mxu0 0.0
  %109 = vmatpush2.xpose.msra.mxu0 0.0
  %110 = vmatprep.mubr.f32.mxu0 0.0
  %111 = vmatmul.mubr.f32.gmra.mxu0 %v28
  %v112 = vpop.f32.mrf.mxu0
  %v113 = vadd.f32 0.0, %v112
  %v114 = vpop.f32.mrf.mxu0
  %115 = vmatprep.mubr.f32.mxu0 0.0
  %116 = vmatmul.mubr.f32.gmra.mxu0 %v29
  %v117 = vpop.f32.mrf.mxu0
  %v118 = vadd.f32 0.0, %v117
  %v119 = vpop.f32.mrf.mxu0
  %120 = vdwg.mxu0
  %v121 = vadd.f32 %v26, %v113
  %v122 = vadd.f32 %v27, %v118
  %123 = vst [vmem:[#allocation2] sm:$0xff] %v121
  %124 = vst [vmem:[#allocation2 + $0x8] sm:$0xff] %v122
  // Predicated region
  $region26: #{_lora_linear_impl.1} parent=0 // pred_check
    %p125 = pneg %p20
  $region27: #{_lora_linear_impl.1} parent=0 // pred_check_branch
    %127 = sbr.rel (%p125) target = $region29
  $region28: #{_lora_linear_impl.1} parent=0 // pred_region
    %v128 = vld [vmem:[%s3] sm:$0xff]
    %v129 = vld [vmem:[%s3 + $0x8] sm:$0xff]
    %v130 = vld [vmem:[%s4] sm:$0xff]
    %v131 = vld [vmem:[%s4 + $0x8] sm:$0xff]
    %v132 = vld [vmem:[%s4 + $0x10] sm:$0xff]
    %v133 = vld [vmem:[%s4 + $0x18] sm:$0xff]
    %v134 = vld [vmem:[%s4 + $0x20] sm:$0xff]
    %v135 = vld [vmem:[%s4 + $0x28] sm:$0xff]
    %v136 = vld [vmem:[%s4 + $0x30] sm:$0xff]
    %v137 = vld [vmem:[%s4 + $0x38] sm:$0xff]
    %v138 = vld [vmem:[%s4 + $0x40] sm:$0xff]
    %v139 = vld [vmem:[%s4 + $0x48] sm:$0xff]
    %v140 = vld [vmem:[%s4 + $0x50] sm:$0xff]
    %v141 = vld [vmem:[%s4 + $0x58] sm:$0xff]
    %v142 = vld [vmem:[%s4 + $0x60] sm:$0xff]
    %v143 = vld [vmem:[%s4 + $0x68] sm:$0xff]
    %v144 = vld [vmem:[%s4 + $0x70] sm:$0xff]
    %v145 = vld [vmem:[%s4 + $0x78] sm:$0xff]
    %146 = vmatprep.subr.mxu0 0.0
    %147 = vmatpush1.msra.mxu0 %v145
    %148 = vmatprep.subr.mxu0 0.0
    %149 = vmatpush1.msra.mxu0 %v144
    %150 = vmatprep.subr.mxu0 0.0
    %151 = vmatpush1.msra.mxu0 %v143
    %152 = vmatprep.subr.mxu0 0.0
    %153 = vmatpush1.msra.mxu0 %v142
    %154 = vmatprep.subr.mxu0 0.0
    %155 = vmatpush1.msra.mxu0 %v141
    %156 = vmatprep.subr.mxu0 0.0
    %157 = vmatpush1.msra.mxu0 %v140
    %158 = vmatprep.subr.mxu0 0.0
    %159 = vmatpush1.msra.mxu0 %v139
    %160 = vmatprep.subr.mxu0 0.0
    %161 = vmatpush1.msra.mxu0 %v138
    %162 = vmatprep.subr.mxu0 0.0
    %163 = vmatpush1.msra.mxu0 %v137
    %164 = vmatprep.subr.mxu0 0.0
    %165 = vmatpush1.msra.mxu0 %v136
    %166 = vmatprep.subr.mxu0 0.0
    %167 = vmatpush1.msra.mxu0 %v135
    %168 = vmatprep.subr.mxu0 0.0
    %169 = vmatpush1.msra.mxu0 %v134
    %170 = vmatprep.subr.mxu0 0.0
    %171 = vmatpush1.msra.mxu0 %v133
    %172 = vmatprep.subr.mxu0 0.0
    %173 = vmatpush1.msra.mxu0 %v132
    %174 = vmatprep.subr.mxu0 0.0
    %175 = vmatpush1.msra.mxu0 %v131
    %176 = vmatprep.subr.mxu0 0.0
    %177 = vmatpush1.msra.mxu0 %v130
    %178 = vmatprep.subr.mxu0 0.0
    %179 = vmatpush2.msra.mxu0 0.0
    %180 = vmatprep.subr.mxu0 0.0
    %181 = vmatpush2.msra.mxu0 0.0
    %182 = vmatprep.subr.mxu0 0.0
    %183 = vmatpush2.msra.mxu0 0.0
    %184 = vmatprep.subr.mxu0 0.0
    %185 = vmatpush2.msra.mxu0 0.0
    %186 = vmatprep.subr.mxu0 0.0
    %187 = vmatpush2.msra.mxu0 0.0
    %188 = vmatprep.subr.mxu0 0.0
    %189 = vmatpush2.msra.mxu0 0.0
    %190 = vmatprep.subr.mxu0 0.0
    %191 = vmatpush2.msra.mxu0 0.0
    %192 = vmatprep.subr.mxu0 0.0
    %193 = vmatpush2.msra.mxu0 0.0
    %194 = vmatprep.subr.mxu0 0.0
    %195 = vmatpush2.msra.mxu0 0.0
    %196 = vmatprep.subr.mxu0 0.0
    %197 = vmatpush2.msra.mxu0 0.0
    %198 = vmatprep.subr.mxu0 0.0
    %199 = vmatpush2.msra.mxu0 0.0
    %200 = vmatprep.subr.mxu0 0.0
    %201 = vmatpush2.msra.mxu0 0.0
    %202 = vmatprep.subr.mxu0 0.0
    %203 = vmatpush2.msra.mxu0 0.0
    %204 = vmatprep.subr.mxu0 0.0
    %205 = vmatpush2.msra.mxu0 0.0
    %206 = vmatprep.subr.mxu0 0.0
    %207 = vmatpush2.msra.mxu0 0.0
    %208 = vmatprep.subr.mxu0 0.0
    %209 = vmatpush2.msra.mxu0 0.0
    %210 = vmatprep.mubr.f32.mxu0 0.0
    %211 = vmatmul.mubr.f32.gmra.mxu0 %v128
    %v212 = vpop.f32.mrf.mxu0
    %v213 = vadd.f32 0.0, %v212
    %v214 = vpop.f32.mrf.mxu0
    %215 = vmatprep.mubr.f32.mxu0 0.0
    %216 = vmatmul.mubr.f32.gmra.mxu0 %v129
    %v217 = vpop.f32.mrf.mxu0
    %v218 = vadd.f32 0.0, %v217
    %v219 = vpop.f32.mrf.mxu0
    %220 = vdwg.mxu0
    %v221 = vld [vmem:[#allocation2] sm:$0xff]
    %v222 = vld [vmem:[#allocation2 + $0x8] sm:$0xff]
    %v223 = vld [vmem:[%s2] sm:$0x1]
    %v225 = vlaneseq
    %v226 = vshrl.u32 %v225, 7
    %v227 = vsub.s32 0, %v226
    %v228 = vrot.slane %v223, %v227
    %v230 = vadd.f32 %v221, %v228
    %v231 = vadd.f32 %v222, %v228
    %v232 = vadd.f32 %v230, %v213
    %v233 = vadd.f32 %v231, %v218
    %234 = vst [vmem:[%s5] sm:$0xff] %v232
    %235 = vst [vmem:[%s5 + $0x8] sm:$0xff] %v233
  $region29: #{_lora_linear_impl.1} parent=0 // pred_fallthru
    _
  // Predicated region
  $region30: #{_lora_linear_impl.1} parent=0 // pred_check
    _
  $region31: #{_lora_linear_impl.1} parent=0 // pred_check_branch
    %237 = sbr.rel (0) target = $region33
  $region32: #{_lora_linear_impl.1} parent=0 // pred_region
    _
  $region33: #{_lora_linear_impl.1} parent=0 // pred_fallthru
    _
  // Predicated region
  $region34: #{_lora_linear_impl.1} parent=0 // pred_check
    _
  $region35: #{_lora_linear_impl.1} parent=0 // pred_check_branch
    %239 = sbr.rel (0) target = $region37
  $region36: #{_lora_linear_impl.1} parent=0 // pred_region
    _
  $region37: #{_lora_linear_impl.1} parent=0 // pred_fallthru
    _

</llo_original>
